<compile_context>
chip_gen: v5e
topology: v5e:2x2
jax: 0.10.0
libtpu: 0.0.40
codegen_flags: <defaults>
</compile_context>

<pallas_src>
import jax
import jax.numpy as jnp
from jax.experimental import pallas as pl
from jax.experimental.pallas import tpu as pltpu


def _idcm_fused_kernel(src_ref, p_ref, n_ref,
                       w_src_ref, b_src_ref,
                       w_sm_ref, b_sm_ref,
                       w_lin_ref, b_lin_ref,
                       v1_ref, v2_ref, v3_ref):
    # Shared linear layer weights, loaded once per grid step (VMEM-resident).
    w_lin = w_lin_ref[...]
    b_lin = b_lin_ref[...]

    def two_layer(x_ref, w1_ref, b1_ref, out_ref):
        # In-kernel bf16 cast of the f32 input tile (VPU work, hidden under MXU).
        x = x_ref[...].astype(jnp.bfloat16)
        h = jnp.dot(x, w1_ref[...], preferred_element_type=jnp.float32)
        h = jnp.maximum(h + b1_ref[...], 0.0).astype(jnp.bfloat16)
        y = jnp.dot(h, w_lin, preferred_element_type=jnp.float32) + b_lin
        out_ref[...] = y.astype(out_ref.dtype)

    two_layer(src_ref, w_src_ref, b_src_ref, v1_ref)   # SourceNN -> linearLayer
    two_layer(p_ref, w_sm_ref, b_sm_ref, v2_ref)       # SMNN (p)  -> linearLayer
    two_layer(n_ref, w_sm_ref, b_sm_ref, v3_ref)       # SMNN (n)  -> linearLayer


def _default_batch_tile():
    """1024 on big-VMEM chips (v5e/v6e: 128 MiB), 512 elsewhere (v7x: 64 MiB)."""
    try:
        if pltpu.get_tpu_info().vmem_capacity_bytes >= (100 << 20):
            return 1024
    except Exception:
        pass
    return 512


def _choose_tile(B, batch_tile):
    """Pick a batch tile: >=2 grid steps when possible (feeds both v7x TCs),
    sublane-aligned (multiple of 8 for f32) unless the block spans the full batch."""
    if B > batch_tile:
        return batch_tile
    half = -(-B // 2)
    tb = -(-half // 8) * 8
    if tb >= B:
        return B  # single tile; block == full array dims (always legal)
    return tb


def idcm_nn_forward(params, source, p_sm, n_sm, *,
                    batch_tile=None, out_dtype=jnp.float32):
    """Fused IDCM_NN forward: one pallas_call, batch-gridded, weights resident."""
    B = source.shape[0]
    out_dim = params["w_lin"].shape[1]

    if batch_tile is None:
        batch_tile = _default_batch_tile()
    tb = _choose_tile(B, batch_tile)
    n_tiles = pl.cdiv(B, tb)

    w_src, b_src = params["w_src"], params["b_src"]
    w_sm, b_sm = params["w_sm"], params["b_sm"]
    w_lin, b_lin = params["w_lin"], params["b_lin"]

    def batched_spec(feat):
        return pl.BlockSpec((tb, feat), lambda i: (i, 0))

    def resident_spec(arr):
        # Full array, constant block index -> stays VMEM-resident across steps.
        # (Could also pass pipeline_mode=pl.Buffered(1) to drop the second
        #  buffer on v7x; constant-index blocks are not re-DMA'd either way.)
        return pl.BlockSpec(arr.shape, lambda i: (0, 0))

    out_struct = jax.ShapeDtypeStruct((B, out_dim), out_dtype)
    out_spec = pl.BlockSpec((tb, out_dim), lambda i: (i, 0))

    v1, v2, v3 = pl.pallas_call(
        _idcm_fused_kernel,
        grid=(n_tiles,),
        out_shape=(out_struct, out_struct, out_struct),
        in_specs=[
            batched_spec(source.shape[1]),
            batched_spec(p_sm.shape[1]),
            batched_spec(n_sm.shape[1]),
            resident_spec(w_src), resident_spec(b_src),
            resident_spec(w_sm), resident_spec(b_sm),
            resident_spec(w_lin), resident_spec(b_lin),
        ],
        out_specs=(out_spec, out_spec, out_spec),
        compiler_params=pltpu.CompilerParams(
            dimension_semantics=("parallel",),  # shard batch tiles across TCs (v7x)
            vmem_limit_bytes=(96 << 20) if tb > 512 else (48 << 20),
        ),
    )(source, p_sm, n_sm, w_src, b_src, w_sm, b_sm, w_lin, b_lin)

    return v1, v2, v3


def init_params(key, source_input_dim, source_output_dim,
                sm_input_dim, sm_output_dim, minus_one_dim):
    """Deterministic synthetic parameters (PyTorch-Linear-like uniform init).

    Weights are stored as (in_dim, out_dim) bf16 (transpose of nn.Linear.weight);
    biases are (1, out_dim) f32. linearLayer is shared across all three views,
    so source_output_dim must equal sm_output_dim (as in the module defaults).

    For production sizes (300/200-wide inputs), zero-pad the input feature dims
    (and the matching weight rows) up to multiples of 128 (300->384, 200->256)
    to keep DMA lanes unmasked and MXU K-streaming full-width; results are
    unchanged since the padded columns are zero.
    """
    assert source_output_dim == sm_output_dim
    ks = jax.random.split(key, 6)

    def w_init(k, shape, fan_in):
        bound = 1.0 / jnp.sqrt(fan_in)
        return jax.random.uniform(k, shape, jnp.float32, -bound, bound).astype(jnp.bfloat16)

    def b_init(k, shape, fan_in):
        bound = 1.0 / jnp.sqrt(fan_in)
        return jax.random.uniform(k, shape, jnp.float32, -bound, bound)

    return {
        # SourceNN.denseL1
        "w_src": w_init(ks[0], (source_input_dim, source_output_dim), source_input_dim),
        "b_src": b_init(ks[1], (1, source_output_dim), source_input_dim),
        # SMNN.denseL1 (shared between p_sm and n_sm)
        "w_sm": w_init(ks[2], (sm_input_dim, sm_output_dim), sm_input_dim),
        "b_sm": b_init(ks[3], (1, sm_output_dim), sm_input_dim),
        # linearLayer (shared across all three views)
        "w_lin": w_init(ks[4], (source_output_dim, minus_one_dim), source_output_dim),
        "b_lin": b_init(ks[5], (1, minus_one_dim), source_output_dim),
    }


def _reference_forward(params, source, p_sm, n_sm):
    """Pure-JAX reference using the same bf16-operand / f32-accumulate recipe."""
    def mlp(x, w1, b1, w2, b2):
        h = jnp.dot(x.astype(jnp.bfloat16), w1,
                    preferred_element_type=jnp.float32) + b1
        h = jnp.maximum(h, 0.0).astype(jnp.bfloat16)
        return jnp.dot(h, w2, preferred_element_type=jnp.float32) + b2

    return (
        mlp(source, params["w_src"], params["b_src"], params["w_lin"], params["b_lin"]),
        mlp(p_sm, params["w_sm"], params["b_sm"], params["w_lin"], params["b_lin"]),
        mlp(n_sm, params["w_sm"], params["b_sm"], params["w_lin"], params["b_lin"]),
    )


if __name__ == "__main__":
    # Small shapes consistent with the module (scaled-down defaults
    # 300/200 -> 1024 -> 512  ==>  64/32 -> 128 -> 128).
    B = 8
    SOURCE_IN, SM_IN = 64, 32
    HIDDEN, OUT = 128, 128

    key = jax.random.PRNGKey(0)
    k_param, k_src, k_p, k_n = jax.random.split(key, 4)

    params = init_params(k_param, SOURCE_IN, HIDDEN, SM_IN, HIDDEN, OUT)

    source = jax.random.normal(k_src, (B, SOURCE_IN), jnp.float32)
    p_sm = jax.random.normal(k_p, (B, SM_IN), jnp.float32)
    n_sm = jax.random.normal(k_n, (B, SM_IN), jnp.float32)

    v1, v2, v3 = idcm_nn_forward(params, source, p_sm, n_sm)
    jax.block_until_ready((v1, v2, v3))

    r1, r2, r3 = _reference_forward(params, source, p_sm, n_sm)
    assert v1.shape == (B, OUT) and v2.shape == (B, OUT) and v3.shape == (B, OUT)
    assert jnp.allclose(v1, r1, atol=2e-2, rtol=2e-2)
    assert jnp.allclose(v2, r2, atol=2e-2, rtol=2e-2)
    assert jnp.allclose(v3, r3, atol=2e-2, rtol=2e-2)

    print("KERNEL_OK")
</pallas_src>

<mosaic_0001>
module attributes {stable_mosaic.version = 11 : i64} {
  func.func @_idcm_fused_kernel(%arg0: i32, %arg1: memref<8x64xf32, #tpu.memory_space<vmem>>, %arg2: memref<8x32xf32, #tpu.memory_space<vmem>>, %arg3: memref<8x32xf32, #tpu.memory_space<vmem>>, %arg4: memref<64x128xbf16, #tpu.memory_space<vmem>>, %arg5: memref<1x128xf32, #tpu.memory_space<vmem>>, %arg6: memref<32x128xbf16, #tpu.memory_space<vmem>>, %arg7: memref<1x128xf32, #tpu.memory_space<vmem>>, %arg8: memref<128x128xbf16, #tpu.memory_space<vmem>>, %arg9: memref<1x128xf32, #tpu.memory_space<vmem>>, %arg10: memref<8x128xf32, #tpu.memory_space<vmem>>, %arg11: memref<8x128xf32, #tpu.memory_space<vmem>>, %arg12: memref<8x128xf32, #tpu.memory_space<vmem>>) attributes {dimension_semantics = [#tpu.dimension_semantics<parallel>], iteration_bounds = array<i64: 1>, scalar_prefetch = 0 : i64, scratch_operands = 0 : i64, tpu.core_type = #tpu.core_type<tc>, window_params = [{transform_indices = @transform_0, window_bounds = array<i64: 8, 64>}, {transform_indices = @transform_1, window_bounds = array<i64: 8, 32>}, {transform_indices = @transform_2, window_bounds = array<i64: 8, 32>}, {pipeline_mode = #tpu.pipeline_mode<synchronous>, transform_indices = @transform_3, window_bounds = array<i64: 64, 128>}, {pipeline_mode = #tpu.pipeline_mode<synchronous>, transform_indices = @transform_4, window_bounds = array<i64: 1, 128>}, {pipeline_mode = #tpu.pipeline_mode<synchronous>, transform_indices = @transform_5, window_bounds = array<i64: 32, 128>}, {pipeline_mode = #tpu.pipeline_mode<synchronous>, transform_indices = @transform_6, window_bounds = array<i64: 1, 128>}, {pipeline_mode = #tpu.pipeline_mode<synchronous>, transform_indices = @transform_7, window_bounds = array<i64: 128, 128>}, {pipeline_mode = #tpu.pipeline_mode<synchronous>, transform_indices = @transform_8, window_bounds = array<i64: 1, 128>}, {transform_indices = @transform_9, window_bounds = array<i64: 8, 128>}, {transform_indices = @transform_10, window_bounds = array<i64: 8, 128>}, {transform_indices = @transform_11, window_bounds = array<i64: 8, 128>}]} {
    %c0 = arith.constant 0 : index
    %c0_0 = arith.constant 0 : index
    %0 = vector.load %arg8[%c0, %c0_0] : memref<128x128xbf16, #tpu.memory_space<vmem>>, vector<128x128xbf16>
    %c0_1 = arith.constant 0 : index
    %c0_2 = arith.constant 0 : index
    %1 = vector.load %arg9[%c0_1, %c0_2] : memref<1x128xf32, #tpu.memory_space<vmem>>, vector<1x128xf32>
    %c0_3 = arith.constant 0 : index
    %c0_4 = arith.constant 0 : index
    %2 = vector.load %arg1[%c0_3, %c0_4] : memref<8x64xf32, #tpu.memory_space<vmem>>, vector<8x64xf32>
    %3 = arith.truncf %2 : vector<8x64xf32> to vector<8x64xbf16>
    %c0_5 = arith.constant 0 : index
    %c0_6 = arith.constant 0 : index
    %4 = vector.load %arg4[%c0_5, %c0_6] : memref<64x128xbf16, #tpu.memory_space<vmem>>, vector<64x128xbf16>
    %cst = arith.constant dense<0.000000e+00> : vector<8x128xf32>
    %5 = tpu.matmul %3, %4, %cst {dimension_numbers = #tpu.dot_dimension_numbers<[1], [0], [0], [1], [0, 0, 1, 1], [], []>} : vector<8x64xbf16>, vector<64x128xbf16>, vector<8x128xf32> -> vector<8x128xf32>
    %c0_7 = arith.constant 0 : index
    %c0_8 = arith.constant 0 : index
    %6 = vector.load %arg5[%c0_7, %c0_8] : memref<1x128xf32, #tpu.memory_space<vmem>>, vector<1x128xf32>
    %7 = vector.broadcast %6 : vector<1x128xf32> to vector<8x128xf32>
    %8 = arith.addf %5, %7 : vector<8x128xf32>
    %cst_9 = arith.constant 0.000000e+00 : f32
    %9 = vector.broadcast %cst_9 : f32 to vector<8x128xf32>
    %10 = arith.maximumf %8, %9 : vector<8x128xf32>
    %11 = arith.truncf %10 : vector<8x128xf32> to vector<8x128xbf16>
    %cst_10 = arith.constant dense<0.000000e+00> : vector<8x128xf32>
    %12 = tpu.matmul %11, %0, %cst_10 {dimension_numbers = #tpu.dot_dimension_numbers<[1], [0], [0], [1], [0, 0, 1, 1], [], []>} : vector<8x128xbf16>, vector<128x128xbf16>, vector<8x128xf32> -> vector<8x128xf32>
    %13 = vector.broadcast %1 : vector<1x128xf32> to vector<8x128xf32>
    %14 = arith.addf %12, %13 : vector<8x128xf32>
    %c0_11 = arith.constant 0 : index
    %c0_12 = arith.constant 0 : index
    %15 = vector.load %arg10[%c0_11, %c0_12] : memref<8x128xf32, #tpu.memory_space<vmem>>, vector<8x128xf32>
    tpu.vector_store %arg10[%c0_11, %c0_12], %14 {strides = array<i32>} : memref<8x128xf32, #tpu.memory_space<vmem>>, vector<8x128xf32>,
    %c0_13 = arith.constant 0 : index
    %c0_14 = arith.constant 0 : index
    %16 = vector.load %arg2[%c0_13, %c0_14] : memref<8x32xf32, #tpu.memory_space<vmem>>, vector<8x32xf32>
    %17 = arith.truncf %16 : vector<8x32xf32> to vector<8x32xbf16>
    %c0_15 = arith.constant 0 : index
    %c0_16 = arith.constant 0 : index
    %18 = vector.load %arg6[%c0_15, %c0_16] : memref<32x128xbf16, #tpu.memory_space<vmem>>, vector<32x128xbf16>
    %cst_17 = arith.constant dense<0.000000e+00> : vector<8x128xf32>
    %19 = tpu.matmul %17, %18, %cst_17 {dimension_numbers = #tpu.dot_dimension_numbers<[1], [0], [0], [1], [0, 0, 1, 1], [], []>} : vector<8x32xbf16>, vector<32x128xbf16>, vector<8x128xf32> -> vector<8x128xf32>
    %c0_18 = arith.constant 0 : index
    %c0_19 = arith.constant 0 : index
    %20 = vector.load %arg7[%c0_18, %c0_19] : memref<1x128xf32, #tpu.memory_space<vmem>>, vector<1x128xf32>
    %21 = vector.broadcast %20 : vector<1x128xf32> to vector<8x128xf32>
    %22 = arith.addf %19, %21 : vector<8x128xf32>
    %cst_20 = arith.constant 0.000000e+00 : f32
    %23 = vector.broadcast %cst_20 : f32 to vector<8x128xf32>
    %24 = arith.maximumf %22, %23 : vector<8x128xf32>
    %25 = arith.truncf %24 : vector<8x128xf32> to vector<8x128xbf16>
    %cst_21 = arith.constant dense<0.000000e+00> : vector<8x128xf32>
    %26 = tpu.matmul %25, %0, %cst_21 {dimension_numbers = #tpu.dot_dimension_numbers<[1], [0], [0], [1], [0, 0, 1, 1], [], []>} : vector<8x128xbf16>, vector<128x128xbf16>, vector<8x128xf32> -> vector<8x128xf32>
    %27 = vector.broadcast %1 : vector<1x128xf32> to vector<8x128xf32>
    %28 = arith.addf %26, %27 : vector<8x128xf32>
    %c0_22 = arith.constant 0 : index
    %c0_23 = arith.constant 0 : index
    %29 = vector.load %arg11[%c0_22, %c0_23] : memref<8x128xf32, #tpu.memory_space<vmem>>, vector<8x128xf32>
    tpu.vector_store %arg11[%c0_22, %c0_23], %28 {strides = array<i32>} : memref<8x128xf32, #tpu.memory_space<vmem>>, vector<8x128xf32>,
    %c0_24 = arith.constant 0 : index
    %c0_25 = arith.constant 0 : index
    %30 = vector.load %arg3[%c0_24, %c0_25] : memref<8x32xf32, #tpu.memory_space<vmem>>, vector<8x32xf32>
    %31 = arith.truncf %30 : vector<8x32xf32> to vector<8x32xbf16>
    %c0_26 = arith.constant 0 : index
    %c0_27 = arith.constant 0 : index
    %32 = vector.load %arg6[%c0_26, %c0_27] : memref<32x128xbf16, #tpu.memory_space<vmem>>, vector<32x128xbf16>
    %cst_28 = arith.constant dense<0.000000e+00> : vector<8x128xf32>
    %33 = tpu.matmul %31, %32, %cst_28 {dimension_numbers = #tpu.dot_dimension_numbers<[1], [0], [0], [1], [0, 0, 1, 1], [], []>} : vector<8x32xbf16>, vector<32x128xbf16>, vector<8x128xf32> -> vector<8x128xf32>
    %c0_29 = arith.constant 0 : index
    %c0_30 = arith.constant 0 : index
    %34 = vector.load %arg7[%c0_29, %c0_30] : memref<1x128xf32, #tpu.memory_space<vmem>>, vector<1x128xf32>
    %35 = vector.broadcast %34 : vector<1x128xf32> to vector<8x128xf32>
    %36 = arith.addf %33, %35 : vector<8x128xf32>
    %cst_31 = arith.constant 0.000000e+00 : f32
    %37 = vector.broadcast %cst_31 : f32 to vector<8x128xf32>
    %38 = arith.maximumf %36, %37 : vector<8x128xf32>
    %39 = arith.truncf %38 : vector<8x128xf32> to vector<8x128xbf16>
    %cst_32 = arith.constant dense<0.000000e+00> : vector<8x128xf32>
    %40 = tpu.matmul %39, %0, %cst_32 {dimension_numbers = #tpu.dot_dimension_numbers<[1], [0], [0], [1], [0, 0, 1, 1], [], []>} : vector<8x128xbf16>, vector<128x128xbf16>, vector<8x128xf32> -> vector<8x128xf32>
    %41 = vector.broadcast %1 : vector<1x128xf32> to vector<8x128xf32>
    %42 = arith.addf %40, %41 : vector<8x128xf32>
    %c0_33 = arith.constant 0 : index
    %c0_34 = arith.constant 0 : index
    %43 = vector.load %arg12[%c0_33, %c0_34] : memref<8x128xf32, #tpu.memory_space<vmem>>, vector<8x128xf32>
    tpu.vector_store %arg12[%c0_33, %c0_34], %42 {strides = array<i32>} : memref<8x128xf32, #tpu.memory_space<vmem>>, vector<8x128xf32>,
    return
  }
  func.func @transform_0(%arg0: i32) -> (i32, i32) {
    %c0_i32 = arith.constant 0 : i32
    %c0_i32_0 = arith.constant 0 : i32
    return %arg0, %c0_i32 : i32, i32
  }
  func.func @transform_1(%arg0: i32) -> (i32, i32) {
    %c0_i32 = arith.constant 0 : i32
    %c0_i32_0 = arith.constant 0 : i32
    return %arg0, %c0_i32 : i32, i32
  }
  func.func @transform_2(%arg0: i32) -> (i32, i32) {
    %c0_i32 = arith.constant 0 : i32
    %c0_i32_0 = arith.constant 0 : i32
    return %arg0, %c0_i32 : i32, i32
  }
  func.func @transform_3(%arg0: i32) -> (i32, i32) {
    %c0_i32 = arith.constant 0 : i32
    %c0_i32_0 = arith.constant 0 : i32
    %c0_i32_1 = arith.constant 0 : i32
    return %c0_i32, %c0_i32_0 : i32, i32
  }
  func.func @transform_4(%arg0: i32) -> (i32, i32) {
    %c0_i32 = arith.constant 0 : i32
    %c0_i32_0 = arith.constant 0 : i32
    %c0_i32_1 = arith.constant 0 : i32
    return %c0_i32, %c0_i32_0 : i32, i32
  }
  func.func @transform_5(%arg0: i32) -> (i32, i32) {
    %c0_i32 = arith.constant 0 : i32
    %c0_i32_0 = arith.constant 0 : i32
    %c0_i32_1 = arith.constant 0 : i32
    return %c0_i32, %c0_i32_0 : i32, i32
  }
  func.func @transform_6(%arg0: i32) -> (i32, i32) {
    %c0_i32 = arith.constant 0 : i32
    %c0_i32_0 = arith.constant 0 : i32
    %c0_i32_1 = arith.constant 0 : i32
    return %c0_i32, %c0_i32_0 : i32, i32
  }
  func.func @transform_7(%arg0: i32) -> (i32, i32) {
    %c0_i32 = arith.constant 0 : i32
    %c0_i32_0 = arith.constant 0 : i32
    %c0_i32_1 = arith.constant 0 : i32
    return %c0_i32, %c0_i32_0 : i32, i32
  }
  func.func @transform_8(%arg0: i32) -> (i32, i32) {
    %c0_i32 = arith.constant 0 : i32
    %c0_i32_0 = arith.constant 0 : i32
    %c0_i32_1 = arith.constant 0 : i32
    return %c0_i32, %c0_i32_0 : i32, i32
  }
  func.func @transform_9(%arg0: i32) -> (i32, i32) {
    %c0_i32 = arith.constant 0 : i32
    %c0_i32_0 = arith.constant 0 : i32
    return %arg0, %c0_i32 : i32, i32
  }
  func.func @transform_10(%arg0: i32) -> (i32, i32) {
    %c0_i32 = arith.constant 0 : i32
    %c0_i32_0 = arith.constant 0 : i32
    return %arg0, %c0_i32 : i32, i32
  }
  func.func @transform_11(%arg0: i32) -> (i32, i32) {
    %c0_i32 = arith.constant 0 : i32
    %c0_i32_0 = arith.constant 0 : i32
    return %arg0, %c0_i32 : i32, i32
  }
}

</mosaic_0001>

<llo_original>
// kernel: tpu_custom_call.1
$region0: #{tpu_custom_call.1}
  #allocation0 [shape = 'u32[]', space=smem, size = 0x4, offset = 0x4, fixed_abs, tag = 'smem constant byte address 0x4 - core index']
  #allocation1 [shape = 'u32[72,128]{1,0:T(1,128)}', space=vmem, size = 0x9000, scoped, tag = 'internal scratch']
  %s0 = inlined_call_operand.hbm [shape: f32[8,64], index: 0, kind: input, shape index: {}]
  %s1 = inlined_call_operand.hbm [shape: f32[8,32], index: 1, kind: input, shape index: {}]
  %s2 = inlined_call_operand.hbm [shape: f32[8,32], index: 2, kind: input, shape index: {}]
  %s3 = inlined_call_operand.hbm [shape: bf16[64,128], index: 3, kind: input, shape index: {}]
  %s4 = inlined_call_operand.vmem [shape: f32[1,128], index: 4, kind: input, shape index: {}]
  %s5 = inlined_call_operand.hbm [shape: bf16[32,128], index: 5, kind: input, shape index: {}]
  %s6 = inlined_call_operand.vmem [shape: f32[1,128], index: 6, kind: input, shape index: {}]
  %s7 = inlined_call_operand.hbm [shape: bf16[128,128], index: 7, kind: input, shape index: {}]
  %s8 = inlined_call_operand.vmem [shape: f32[1,128], index: 8, kind: input, shape index: {}]
  %s9 = inlined_call_operand.hbm [shape: f32[8,128], index: 9, kind: output, shape index: {0}]
  %s10 = inlined_call_operand.hbm [shape: f32[8,128], index: 10, kind: output, shape index: {1}]
  %s11 = inlined_call_operand.hbm [shape: f32[8,128], index: 11, kind: output, shape index: {2}]
  %12 = xla_tuple %s9, %s10, %s11
  %s13 = sld [smem:[#allocation0]]
  $region86: #{tpu_custom_call.1} parent=0
    _
  %s15 = ssub.s32 1, %s13
  %s16 = scalar_select 0, %s15, %s13
  $region1: #{tpu_custom_call.1} parent=0
    #allocation2 [shape = 'u8[4096]{0}', space=vmem, size = 0x1000, scoped, tag = 'input window, operand 0, single buffered']
    #allocation3 [shape = 's32[1]{0}', space=sflag, size = 0x4, scoped, tag = 'scoped memory for tpu_custom_call.1']
    #allocation4 [shape = 's32[1]{0}', space=sflag, size = 0x4, scoped, tag = 'scoped memory for tpu_custom_call.1']
    #allocation5 [shape = 'u8[4096]{0}', space=vmem, size = 0x1000, scoped, tag = 'input window, operand 1, single buffered']
    #allocation6 [shape = 's32[1]{0}', space=sflag, size = 0x4, scoped, tag = 'scoped memory for tpu_custom_call.1']
    #allocation7 [shape = 'u8[4096]{0}', space=vmem, size = 0x1000, scoped, tag = 'input window, operand 2, single buffered']
    #allocation8 [shape = 'u8[16384]{0}', space=vmem, size = 0x4000, scoped, tag = 'input window, operand 3, single buffered']
    #allocation9 [shape = 's32[1]{0}', space=sflag, size = 0x4, scoped, tag = 'scoped memory for tpu_custom_call.1']
    #allocation10 [shape = 'u8[8192]{0}', space=vmem, size = 0x2000, scoped, tag = 'input window, operand 5, single buffered']
    #allocation11 [shape = 'u8[32768]{0}', space=vmem, size = 0x8000, scoped, tag = 'input window, operand 7, single buffered']
    #allocation12 [shape = 's32[1]{0}', space=sflag, size = 0x4, scoped, tag = 'scoped memory for tpu_custom_call.1']
    #allocation13 [shape = 'u8[4096]{0}', space=vmem, size = 0x1000, scoped, tag = 'output window, operand 0, single buffered']
    #allocation14 [shape = 'u8[4096]{0}', space=vmem, size = 0x1000, scoped, tag = 'output window, operand 1, single buffered']
    #allocation15 [shape = 's32[1]{0}', space=sflag, size = 0x4, scoped, tag = 'scoped memory for tpu_custom_call.1']
    #allocation16 [shape = 'u8[4096]{0}', space=vmem, size = 0x1000, scoped, tag = 'output window, operand 2, single buffered']
    %17 = vsyncpa [#allocation3], 0
    %18 = vsyncpa [#allocation6], 0
    %19 = vsyncpa [#allocation9], 0
    %20 = vsyncpa [#allocation12], 0
    %21 = vsyncpa [#allocation4], 0
    %22 = vsyncpa [#allocation15], 0
    // Predicated region
    $region2: #{tpu_custom_call.1} parent=1 // pred_check
      _
    $region3: #{tpu_custom_call.1} parent=1 // pred_check_branch
      %24 = sbr.rel (0) target = $region5
    $region4: #{tpu_custom_call.1} parent=1 // pred_region
      %26 = vsyncadd [#allocation3], 0
      %s28 = sshll.u32 %s0, 4
      %s29 = int_to_ptr.hbm [resolvable:$true] %s28
      %s30 = sshll.u32 [#allocation2], 4
      %s31 = int_to_ptr.vmem [resolvable:$true] %s30
      %33 = dma.hbm_to_vmem [thread:$0]  %s29, 128, %s31, [#allocation3]
    $region5: #{tpu_custom_call.1} parent=1 // pred_fallthru
      _
    // Predicated region
    $region6: #{tpu_custom_call.1} parent=1 // pred_check
      _
    $region7: #{tpu_custom_call.1} parent=1 // pred_check_branch
      %35 = sbr.rel (0) target = $region9
    $region8: #{tpu_custom_call.1} parent=1 // pred_region
      %37 = vsyncadd [#allocation6], 0
      %s39 = sshll.u32 %s1, 4
      %s40 = int_to_ptr.hbm [resolvable:$true] %s39
      %s41 = sshll.u32 [#allocation5], 4
      %s42 = int_to_ptr.vmem [resolvable:$true] %s41
      %44 = dma.hbm_to_vmem [thread:$0]  %s40, 128, %s42, [#allocation6]
    $region9: #{tpu_custom_call.1} parent=1 // pred_fallthru
      _
    // Predicated region
    $region10: #{tpu_custom_call.1} parent=1 // pred_check
      _
    $region11: #{tpu_custom_call.1} parent=1 // pred_check_branch
      %46 = sbr.rel (0) target = $region13
    $region12: #{tpu_custom_call.1} parent=1 // pred_region
      %48 = vsyncadd [#allocation6], 0
      %s50 = sshll.u32 %s2, 4
      %s51 = int_to_ptr.hbm [resolvable:$true] %s50
      %s52 = sshll.u32 [#allocation7], 4
      %s53 = int_to_ptr.vmem [resolvable:$true] %s52
      %55 = dma.hbm_to_vmem [thread:$0]  %s51, 128, %s53, [#allocation6]
    $region13: #{tpu_custom_call.1} parent=1 // pred_fallthru
      _
    // Predicated region
    $region14: #{tpu_custom_call.1} parent=1 // pred_check
      _
    $region15: #{tpu_custom_call.1} parent=1 // pred_check_branch
      %57 = sbr.rel (0) target = $region17
    $region16: #{tpu_custom_call.1} parent=1 // pred_region
      %59 = vsyncadd [#allocation9], 0
      %s60 = sshll.u32 %s3, 4
      %s61 = int_to_ptr.hbm [resolvable:$true] %s60
      %s62 = sshll.u32 [#allocation8], 4
      %s63 = int_to_ptr.vmem [resolvable:$true] %s62
      %68 = dma.hbm_to_vmem [thread:$0]  %s61, 512, %s63, [#allocation9], 64, 64, 4
    $region17: #{tpu_custom_call.1} parent=1 // pred_fallthru
      _
    // Predicated region
    $region18: #{tpu_custom_call.1} parent=1 // pred_check
      _
    $region19: #{tpu_custom_call.1} parent=1 // pred_check_branch
      %70 = sbr.rel (0) target = $region21
    $region20: #{tpu_custom_call.1} parent=1 // pred_region
      _
    $region21: #{tpu_custom_call.1} parent=1 // pred_fallthru
      _
    // Predicated region
    $region22: #{tpu_custom_call.1} parent=1 // pred_check
      _
    $region23: #{tpu_custom_call.1} parent=1 // pred_check_branch
      %72 = sbr.rel (0) target = $region25
    $region24: #{tpu_custom_call.1} parent=1 // pred_region
      %74 = vsyncadd [#allocation9], 0
      %s75 = sshll.u32 %s5, 4
      %s76 = int_to_ptr.hbm [resolvable:$true] %s75
      %s77 = sshll.u32 [#allocation10], 4
      %s78 = int_to_ptr.vmem [resolvable:$true] %s77
      %83 = dma.hbm_to_vmem [thread:$0]  %s76, 256, %s78, [#allocation9], 64, 64, 4
    $region25: #{tpu_custom_call.1} parent=1 // pred_fallthru
      _
    // Predicated region
    $region26: #{tpu_custom_call.1} parent=1 // pred_check
      _
    $region27: #{tpu_custom_call.1} parent=1 // pred_check_branch
      %85 = sbr.rel (0) target = $region29
    $region28: #{tpu_custom_call.1} parent=1 // pred_region
      _
    $region29: #{tpu_custom_call.1} parent=1 // pred_fallthru
      _
    // Predicated region
    $region30: #{tpu_custom_call.1} parent=1 // pred_check
      _
    $region31: #{tpu_custom_call.1} parent=1 // pred_check_branch
      %87 = sbr.rel (0) target = $region33
    $region32: #{tpu_custom_call.1} parent=1 // pred_region
      %89 = vsyncadd [#allocation12], 0
      %s90 = sshll.u32 %s7, 4
      %s91 = int_to_ptr.hbm [resolvable:$true] %s90
      %s92 = sshll.u32 [#allocation11], 4
      %s93 = int_to_ptr.vmem [resolvable:$true] %s92
      %98 = dma.hbm_to_vmem [thread:$0]  %s91, 1024, %s93, [#allocation12], 64, 64, 4
    $region33: #{tpu_custom_call.1} parent=1 // pred_fallthru
      _
    // Predicated region
    $region34: #{tpu_custom_call.1} parent=1 // pred_check
      _
    $region35: #{tpu_custom_call.1} parent=1 // pred_check_branch
      %100 = sbr.rel (0) target = $region37
    $region36: #{tpu_custom_call.1} parent=1 // pred_region
      _
    $region37: #{tpu_custom_call.1} parent=1 // pred_fallthru
      _
    // Predicated region
    $region38: #{tpu_custom_call.1} parent=1 // pred_check
      _
    $region39: #{tpu_custom_call.1} parent=1 // pred_check_branch
      %102 = sbr.rel (0) target = $region41
    $region40: #{tpu_custom_call.1} parent=1 // pred_region
      %104 = dma.done [#allocation3], 128
    $region41: #{tpu_custom_call.1} parent=1 // pred_fallthru
      _
    // Predicated region
    $region42: #{tpu_custom_call.1} parent=1 // pred_check
      _
    $region43: #{tpu_custom_call.1} parent=1 // pred_check_branch
      %106 = sbr.rel (0) target = $region45
    $region44: #{tpu_custom_call.1} parent=1 // pred_region
      %108 = dma.done [#allocation6], 128
    $region45: #{tpu_custom_call.1} parent=1 // pred_fallthru
      _
    // Predicated region
    $region46: #{tpu_custom_call.1} parent=1 // pred_check
      _
    $region47: #{tpu_custom_call.1} parent=1 // pred_check_branch
      %110 = sbr.rel (0) target = $region49
    $region48: #{tpu_custom_call.1} parent=1 // pred_region
      %112 = dma.done [#allocation6], 128
    $region49: #{tpu_custom_call.1} parent=1 // pred_fallthru
      _
    // Predicated region
    $region50: #{tpu_custom_call.1} parent=1 // pred_check
      _
    $region51: #{tpu_custom_call.1} parent=1 // pred_check_branch
      %114 = sbr.rel (0) target = $region53
    $region52: #{tpu_custom_call.1} parent=1 // pred_region
      %116 = dma.done [#allocation9], 512
    $region53: #{tpu_custom_call.1} parent=1 // pred_fallthru
      _
    // Predicated region
    $region54: #{tpu_custom_call.1} parent=1 // pred_check
      _
    $region55: #{tpu_custom_call.1} parent=1 // pred_check_branch
      %118 = sbr.rel (0) target = $region57
    $region56: #{tpu_custom_call.1} parent=1 // pred_region
      %120 = dma.done [#allocation9], 256
    $region57: #{tpu_custom_call.1} parent=1 // pred_fallthru
      _
    // Predicated region
    $region58: #{tpu_custom_call.1} parent=1 // pred_check
      _
    $region59: #{tpu_custom_call.1} parent=1 // pred_check_branch
      %122 = sbr.rel (0) target = $region61
    $region60: #{tpu_custom_call.1} parent=1 // pred_region
      %124 = dma.done [#allocation12], 1024
    $region61: #{tpu_custom_call.1} parent=1 // pred_fallthru
      _
    %v126 = vld [vmem:[#allocation11] sm:$0xf]
    %v127 = vld [vmem:[#allocation11 + $0x4] sm:$0xf]
    %v128 = vld [vmem:[#allocation11 + $0x8] sm:$0xf]
    %v129 = vld [vmem:[#allocation11 + $0xc] sm:$0xf]
    %v130 = vld [vmem:[#allocation11 + $0x10] sm:$0xf]
    %v131 = vld [vmem:[#allocation11 + $0x14] sm:$0xf]
    %v132 = vld [vmem:[#allocation11 + $0x18] sm:$0xf]
    %v133 = vld [vmem:[#allocation11 + $0x1c] sm:$0xf]
    %v134 = vld [vmem:[#allocation11 + $0x20] sm:$0xf]
    %v135 = vld [vmem:[#allocation11 + $0x24] sm:$0xf]
    %v136 = vld [vmem:[#allocation11 + $0x28] sm:$0xf]
    %v137 = vld [vmem:[#allocation11 + $0x2c] sm:$0xf]
    %v138 = vld [vmem:[#allocation11 + $0x30] sm:$0xf]
    %v139 = vld [vmem:[#allocation11 + $0x34] sm:$0xf]
    %v140 = vld [vmem:[#allocation11 + $0x38] sm:$0xf]
    %v141 = vld [vmem:[#allocation11 + $0x3c] sm:$0xf]
    %v142 = vld [vmem:[%s8] sm:$0x1]
    %v143 = vld [vmem:[#allocation2] sm:$0xff]
    %v144 = vpack.c.bf16 %v143, %v143
    %v145 = vld [vmem:[#allocation8] sm:$0xf]
    %v146 = vld [vmem:[#allocation8 + $0x4] sm:$0xf]
    %v147 = vld [vmem:[#allocation8 + $0x8] sm:$0xf]
    %v148 = vld [vmem:[#allocation8 + $0xc] sm:$0xf]
    %v149 = vld [vmem:[#allocation8 + $0x10] sm:$0xf]
    %v150 = vld [vmem:[#allocation8 + $0x14] sm:$0xf]
    %v151 = vld [vmem:[#allocation8 + $0x18] sm:$0xf]
    %v152 = vld [vmem:[#allocation8 + $0x1c] sm:$0xf]
    %v153 = vld [vmem:[%s4] sm:$0x1]
    %v155 = vperm.slane %v153, 0
    %v165 = vunpack.c.l.b16 %v145
    %v166 = vunpack.c.l.b16 %v146
    %v167 = vunpack.c.l.b16 %v147
    %v168 = vunpack.c.l.b16 %v148
    %v169 = vunpack.c.l.b16 %v149
    %v170 = vunpack.c.l.b16 %v150
    %v171 = vunpack.c.l.b16 %v151
    %v172 = vunpack.c.l.b16 %v152
    %v173 = vpack.c.b16 %v166, %v165
    %v174 = vpack.c.b16 %v168, %v167
    %v175 = vpack.c.b16 %v170, %v169
    %v176 = vpack.c.b16 %v172, %v171
    %vm181 = vcmask 523264
    %v183 = vsel %vm181, %v144, 0
    %185 = vmatpush.bf16.msra.mxu0 0
    %186 = vmatpush.bf16.msra.mxu0 0
    %187 = vmatpush.bf16.msra.mxu0 0
    %188 = vmatpush.bf16.msra.mxu0 0
    %189 = vmatpush.bf16.msra.mxu0 %v176
    %190 = vmatpush.bf16.msra.mxu0 %v175
    %191 = vmatpush.bf16.msra.mxu0 %v174
    %192 = vmatpush.bf16.msra.mxu0 %v173
    %193 = vmatmul.bf16.gmra.mxu0 %v183
    %v194 = vpop.f32.mrf.mxu0
    %v195 = vadd.f32 %v155, %v194
    %v196 = vpop.f32.mrf.mxu0
    %197 = vdwg.mxu0
    %v198 = vmax.f32 %v195, 0.0
    %v199 = vpack.c.bf16 %v198, %v198
    %v201 = vperm.slane %v142, 0
    %v219 = vunpack.c.l.b16 %v126
    %v220 = vunpack.c.l.b16 %v127
    %v221 = vunpack.c.l.b16 %v128
    %v222 = vunpack.c.l.b16 %v129
    %v223 = vunpack.c.l.b16 %v130
    %v224 = vunpack.c.l.b16 %v131
    %v225 = vunpack.c.l.b16 %v132
    %v226 = vunpack.c.l.b16 %v133
    %v227 = vunpack.c.l.b16 %v134
    %v228 = vunpack.c.l.b16 %v135
    %v229 = vunpack.c.l.b16 %v136
    %v230 = vunpack.c.l.b16 %v137
    %v231 = vunpack.c.l.b16 %v138
    %v232 = vunpack.c.l.b16 %v139
    %v233 = vunpack.c.l.b16 %v140
    %v234 = vunpack.c.l.b16 %v141
    %v235 = vpack.c.b16 %v220, %v219
    %v236 = vpack.c.b16 %v222, %v221
    %v237 = vpack.c.b16 %v224, %v223
    %v238 = vpack.c.b16 %v226, %v225
    %v239 = vpack.c.b16 %v228, %v227
    %v240 = vpack.c.b16 %v230, %v229
    %v241 = vpack.c.b16 %v232, %v231
    %v242 = vpack.c.b16 %v234, %v233
    %251 = vmatpush.bf16.msra.mxu0 %v242
    %252 = vmatpush.bf16.msra.mxu0 %v241
    %253 = vmatpush.bf16.msra.mxu0 %v240
    %254 = vmatpush.bf16.msra.mxu0 %v239
    %255 = vmatpush.bf16.msra.mxu0 %v238
    %256 = vmatpush.bf16.msra.mxu0 %v237
    %257 = vmatpush.bf16.msra.mxu0 %v236
    %258 = vmatpush.bf16.msra.mxu0 %v235
    %259 = vmatmul.bf16.gmra.mxu0 %v199
    %v260 = vpop.f32.mrf.mxu0
    %v261 = vadd.f32 %v201, %v260
    %v262 = vpop.f32.mrf.mxu0
    %263 = vdwg.mxu0
    %264 = vst [vmem:[#allocation13] sm:$0xff] %v261
    %v265 = vld [vmem:[#allocation5] sm:$0xff]
    %v266 = vpack.c.bf16 %v265, %v265
    %v267 = vld [vmem:[#allocation10] sm:$0xf]
    %v268 = vld [vmem:[#allocation10 + $0x4] sm:$0xf]
    %v269 = vld [vmem:[#allocation10 + $0x8] sm:$0xf]
    %v270 = vld [vmem:[#allocation10 + $0xc] sm:$0xf]
    %v271 = vld [vmem:[%s6] sm:$0x1]
    %v273 = vperm.slane %v271, 0
    %v279 = vunpack.c.l.b16 %v267
    %v280 = vunpack.c.l.b16 %v268
    %v281 = vunpack.c.l.b16 %v269
    %v282 = vunpack.c.l.b16 %v270
    %v283 = vpack.c.b16 %v280, %v279
    %v284 = vpack.c.b16 %v282, %v281
    %vm287 = vcmask 261120
    %v289 = vsel %vm287, %v266, 0
    %291 = vmatpush.bf16.msra.mxu0 0
    %292 = vmatpush.bf16.msra.mxu0 0
    %293 = vmatpush.bf16.msra.mxu0 0
    %294 = vmatpush.bf16.msra.mxu0 0
    %295 = vmatpush.bf16.msra.mxu0 0
    %296 = vmatpush.bf16.msra.mxu0 0
    %297 = vmatpush.bf16.msra.mxu0 %v284
    %298 = vmatpush.bf16.msra.mxu0 %v283
    %299 = vmatmul.bf16.gmra.mxu0 %v289
    %v300 = vpop.f32.mrf.mxu0
    %v301 = vadd.f32 %v273, %v300
    %v302 = vpop.f32.mrf.mxu0
    %303 = vdwg.mxu0
    %v304 = vmax.f32 %v301, 0.0
    %v305 = vpack.c.bf16 %v304, %v304
    %306 = vmatpush.bf16.msra.mxu0 %v242
    %307 = vmatpush.bf16.msra.mxu0 %v241
    %308 = vmatpush.bf16.msra.mxu0 %v240
    %309 = vmatpush.bf16.msra.mxu0 %v239
    %310 = vmatpush.bf16.msra.mxu0 %v238
    %311 = vmatpush.bf16.msra.mxu0 %v237
    %312 = vmatpush.bf16.msra.mxu0 %v236
    %313 = vmatpush.bf16.msra.mxu0 %v235
    %314 = vmatmul.bf16.gmra.mxu0 %v305
    %v315 = vpop.f32.mrf.mxu0
    %v316 = vadd.f32 %v201, %v315
    %v317 = vpop.f32.mrf.mxu0
    %318 = vdwg.mxu0
    %319 = vst [vmem:[#allocation14] sm:$0xff] %v316
    %v320 = vld [vmem:[#allocation7] sm:$0xff]
    %v321 = vpack.c.bf16 %v320, %v320
    %v322 = vld [vmem:[#allocation10] sm:$0xf]
    %v323 = vld [vmem:[#allocation10 + $0x4] sm:$0xf]
    %v324 = vld [vmem:[#allocation10 + $0x8] sm:$0xf]
    %v325 = vld [vmem:[#allocation10 + $0xc] sm:$0xf]
    %v326 = vld [vmem:[%s6] sm:$0x1]
    %v328 = vperm.slane %v326, 0
    %v334 = vunpack.c.l.b16 %v322
    %v335 = vunpack.c.l.b16 %v323
    %v336 = vunpack.c.l.b16 %v324
    %v337 = vunpack.c.l.b16 %v325
    %v338 = vpack.c.b16 %v335, %v334
    %v339 = vpack.c.b16 %v337, %v336
    %v343 = vsel %vm287, %v321, 0
    %345 = vmatpush.bf16.msra.mxu0 0
    %346 = vmatpush.bf16.msra.mxu0 0
    %347 = vmatpush.bf16.msra.mxu0 0
    %348 = vmatpush.bf16.msra.mxu0 0
    %349 = vmatpush.bf16.msra.mxu0 0
    %350 = vmatpush.bf16.msra.mxu0 0
    %351 = vmatpush.bf16.msra.mxu0 %v339
    %352 = vmatpush.bf16.msra.mxu0 %v338
    %353 = vmatmul.bf16.gmra.mxu0 %v343
    %v354 = vpop.f32.mrf.mxu0
    %v355 = vadd.f32 %v328, %v354
    %v356 = vpop.f32.mrf.mxu0
    %357 = vdwg.mxu0
    %v358 = vmax.f32 %v355, 0.0
    %v359 = vpack.c.bf16 %v358, %v358
    %360 = vmatpush.bf16.msra.mxu0 %v242
    %361 = vmatpush.bf16.msra.mxu0 %v241
    %362 = vmatpush.bf16.msra.mxu0 %v240
    %363 = vmatpush.bf16.msra.mxu0 %v239
    %364 = vmatpush.bf16.msra.mxu0 %v238
    %365 = vmatpush.bf16.msra.mxu0 %v237
    %366 = vmatpush.bf16.msra.mxu0 %v236
    %367 = vmatpush.bf16.msra.mxu0 %v235
    %368 = vmatmul.bf16.gmra.mxu0 %v359
    %v369 = vpop.f32.mrf.mxu0
    %v370 = vadd.f32 %v201, %v369
    %v371 = vpop.f32.mrf.mxu0
    %372 = vdwg.mxu0
    %373 = vst [vmem:[#allocation16] sm:$0xff] %v370
    // Predicated region
    $region62: #{tpu_custom_call.1} parent=1 // pred_check
      _
    $region63: #{tpu_custom_call.1} parent=1 // pred_check_branch
      %375 = sbr.rel (0) target = $region65
    $region64: #{tpu_custom_call.1} parent=1 // pred_region
      %377 = vsyncadd [#allocation4], 0
      %s379 = sshll.u32 [#allocation13], 4
      %s380 = int_to_ptr.vmem [resolvable:$true] %s379
      %s381 = sshll.u32 %s9, 4
      %s382 = int_to_ptr.hbm [resolvable:$true] %s381
      %384 = dma.vmem_to_hbm [thread:$0]  %s380, 128, %s382, [#allocation4]
    $region65: #{tpu_custom_call.1} parent=1 // pred_fallthru
      _
    // Predicated region
    $region66: #{tpu_custom_call.1} parent=1 // pred_check
      _
    $region67: #{tpu_custom_call.1} parent=1 // pred_check_branch
      %386 = sbr.rel (0) target = $region69
    $region68: #{tpu_custom_call.1} parent=1 // pred_region
      %388 = vsyncadd [#allocation15], 0
      %s390 = sshll.u32 [#allocation14], 4
      %s391 = int_to_ptr.vmem [resolvable:$true] %s390
      %s392 = sshll.u32 %s10, 4
      %s393 = int_to_ptr.hbm [resolvable:$true] %s392
      %395 = dma.vmem_to_hbm [thread:$0]  %s391, 128, %s393, [#allocation15]
    $region69: #{tpu_custom_call.1} parent=1 // pred_fallthru
      _
    // Predicated region
    $region70: #{tpu_custom_call.1} parent=1 // pred_check
      _
    $region71: #{tpu_custom_call.1} parent=1 // pred_check_branch
      %397 = sbr.rel (0) target = $region73
    $region72: #{tpu_custom_call.1} parent=1 // pred_region
      %399 = vsyncadd [#allocation15], 0
      %s401 = sshll.u32 [#allocation16], 4
      %s402 = int_to_ptr.vmem [resolvable:$true] %s401
      %s403 = sshll.u32 %s11, 4
      %s404 = int_to_ptr.hbm [resolvable:$true] %s403
      %406 = dma.vmem_to_hbm [thread:$0]  %s402, 128, %s404, [#allocation15]
    $region73: #{tpu_custom_call.1} parent=1 // pred_fallthru
      _
    // Predicated region
    $region74: #{tpu_custom_call.1} parent=1 // pred_check
      _
    $region75: #{tpu_custom_call.1} parent=1 // pred_check_branch
      %408 = sbr.rel (0) target = $region77
    $region76: #{tpu_custom_call.1} parent=1 // pred_region
      %410 = dma.done [#allocation4], 128
    $region77: #{tpu_custom_call.1} parent=1 // pred_fallthru
      _
    // Predicated region
    $region78: #{tpu_custom_call.1} parent=1 // pred_check
      _
    $region79: #{tpu_custom_call.1} parent=1 // pred_check_branch
      %412 = sbr.rel (0) target = $region81
    $region80: #{tpu_custom_call.1} parent=1 // pred_region
      %414 = dma.done [#allocation15], 128
    $region81: #{tpu_custom_call.1} parent=1 // pred_fallthru
      _
    // Predicated region
    $region82: #{tpu_custom_call.1} parent=1 // pred_check
      _
    $region83: #{tpu_custom_call.1} parent=1 // pred_check_branch
      %416 = sbr.rel (0) target = $region85
    $region84: #{tpu_custom_call.1} parent=1 // pred_region
      %418 = dma.done [#allocation15], 128
    $region85: #{tpu_custom_call.1} parent=1 // pred_fallthru
      _
    %419 = vsyncpa [#allocation3], 1
    %420 = vsyncpa [#allocation6], 1
    %421 = vsyncpa [#allocation9], 1
    %422 = vsyncpa [#allocation12], 1
    %423 = vsyncpa [#allocation4], 1
    %424 = vsyncpa [#allocation15], 1

</llo_original>
